<compile_context>
chip_gen: v7x
topology: tpu7x:2x2x1
jax: 0.10.0
libtpu: 0.0.40
codegen_flags: <defaults>
</compile_context>

<pallas_src>
import functools

import jax
import jax.numpy as jnp
from jax.experimental import pallas as pl
from jax.experimental.pallas import tpu as pltpu


def _kl_partial_kernel(x_ref, y_ref, o_ref, *, rows, tile_rows, need_mask):
    """Writes the sum over this block of (y*log(y) - y*x) into its own SMEM slot."""
    x = x_ref[...].astype(jnp.float32)
    y = y_ref[...].astype(jnp.float32)
    # xlogy(y, y): contributes 0 where y == 0 (matches torch.nn.functional.kl_div).
    # Elementwise select discards the NaN/-inf produced in the y == 0 lanes.
    ylogy = jnp.where(y > 0, y * jnp.log(y), 0.0)
    # NOTE: y == 0 with x == -inf yields NaN here, matching torch's kl_div semantics.
    contrib = ylogy - y * x

    def _reduce(v):
        # Reduce rows (sublanes) first, then lanes, for better summation behavior on
        # large blocks than one flat sequential reduce.
        return jnp.sum(jnp.sum(v, axis=0, keepdims=True))

    if not need_mask:
        o_ref[0, 0] = _reduce(contrib)
    else:
        j = pl.program_id(0)
        is_last = j == pl.num_programs(0) - 1

        @pl.when(jnp.logical_not(is_last))
        def _():
            # Interior blocks: no mask work on the critical path.
            o_ref[0, 0] = _reduce(contrib)

        @pl.when(is_last)
        def _():
            # Last block extends past `rows`; OOB contents are undefined (may be
            # NaN/Inf) -> select-zero them (never arithmetic-mask).
            row = j * tile_rows + jax.lax.broadcasted_iota(jnp.int32, contrib.shape, 0)
            o_ref[0, 0] = _reduce(jnp.where(row < rows, contrib, 0.0))


def _pick_lane(n):
    """Largest lane width (multiple of 128) that divides n, so the reshape is free."""
    for lane in (4096, 2048, 1024, 512, 256, 128):
        if n >= lane and n % lane == 0:
            return lane
    return 128  # rare fallback: numel not a multiple of 128 -> tiny tail pad


def kl_div_loss(x, y, weight=0.01, *, target_block_bytes=8 * 1024 * 1024):
    """weight * F.kl_div(x, y, reduction='batchmean').mean() — x log-probs, y probs."""
    assert x.shape == y.shape
    batch = x.shape[0]
    n = x.size
    itemsize = x.dtype.itemsize
    # Packed-sublane granularity: 8 for f32, 16 for bf16, 32 for int8/fp8.
    sublane_mult = max(8, 32 // itemsize)

    lane = _pick_lane(n)
    xf = x.reshape(-1)
    yf = y.reshape(-1)
    pad = (-n) % lane
    if pad:
        # TODO(synk): only hit when numel is not a multiple of 128 (pads < 128 elems,
        # zeros contribute 0); mask in-kernel instead if this path ever gets hot.
        xf = jnp.pad(xf, (0, pad))
        yf = jnp.pad(yf, (0, pad))
    rows = xf.size // lane
    x2 = xf.reshape(rows, lane)
    y2 = yf.reshape(rows, lane)

    # ~target_block_bytes of *native-dtype* HBM traffic per input per grid step.
    tr = max(1, (target_block_bytes // itemsize) // lane)
    # Keep >= 4 grid steps when possible so v7x's two TensorCores both get work
    # (grid axis is "parallel").
    if rows >= 4 * sublane_mult:
        quarter = (-(-rows // 4) // sublane_mult) * sublane_mult
        tr = min(tr, max(sublane_mult, quarter))

    if tr >= rows:
        tile_rows = rows          # full-height block (always legal)
        need_mask = False
    else:
        tr_aligned = max(sublane_mult, (tr // sublane_mult) * sublane_mult)
        # Prefer a divisor of `rows` near the target so no block needs the tail mask.
        tile_rows = None
        lower = max(sublane_mult, tr_aligned - 64 * sublane_mult)
        for t in range(tr_aligned, lower - 1, -sublane_mult):
            if rows % t == 0:
                tile_rows = t
                break
        if tile_rows is None:
            tile_rows = tr_aligned
        need_mask = (rows % tile_rows) != 0

    num_blocks = -(-rows // tile_rows)

    kernel = functools.partial(
        _kl_partial_kernel, rows=rows, tile_rows=tile_rows, need_mask=need_mask
    )

    cost = pl.CostEstimate(
        flops=5 * n,
        transcendentals=n,
        bytes_accessed=(x2.size + y2.size) * itemsize + num_blocks * 4,
    )

    partials = pl.pallas_call(
        kernel,
        out_shape=jax.ShapeDtypeStruct((num_blocks, 1), jnp.float32),
        grid_spec=pltpu.PrefetchScalarGridSpec(
            num_scalar_prefetch=0,
            grid=(num_blocks,),
            in_specs=[
                pl.BlockSpec((tile_rows, lane), lambda j: (j, 0)),
                pl.BlockSpec((tile_rows, lane), lambda j: (j, 0)),
            ],
            out_specs=pl.BlockSpec(
                (1, 1), lambda j: (j, 0), memory_space=pltpu.SMEM
            ),
        ),
        compiler_params=pltpu.CompilerParams(
            dimension_semantics=("parallel",),
            vmem_limit_bytes=40 * 1024 * 1024,
        ),
        cost_estimate=cost,
    )(x2, y2)

    total = jnp.sum(partials)
    return (jnp.float32(weight) * total / jnp.float32(batch)).astype(jnp.float32)


if __name__ == "__main__":
    key = jax.random.PRNGKey(0)
    kx, ky = jax.random.split(key)

    B, C, H, W = 2, 4, 16, 16
    # x: log-probabilities over the channel axis (F.kl_div expects log-probs input)
    logits = jax.random.normal(kx, (B, C, H, W), dtype=jnp.float32)
    x = jax.nn.log_softmax(logits, axis=1)
    # y: probabilities (target distribution) over the channel axis
    y_logits = jax.random.normal(ky, (B, C, H, W), dtype=jnp.float32)
    y = jax.nn.softmax(y_logits, axis=1)

    out = kl_div_loss(x, y, weight=0.01)
    out = jax.block_until_ready(out)

    # Pure-JAX reference check
    ref = 0.01 * (jnp.sum(jnp.where(y > 0, y * jnp.log(y), 0.0) - y * x) / B)
    assert jnp.allclose(out, ref, rtol=1e-5, atol=1e-6), (out, ref)

    print("KERNEL_OK")
</pallas_src>

<mosaic_0001>
module attributes {stable_mosaic.version = 11 : i64} {
  func.func @_kl_partial_kernel(%arg0: i32, %arg1: memref<1x2048xf32, #tpu.memory_space<vmem>>, %arg2: memref<1x2048xf32, #tpu.memory_space<vmem>>, %arg3: memref<1x1xf32, #tpu.memory_space<smem>>) attributes {dimension_semantics = [#tpu.dimension_semantics<parallel>], iteration_bounds = array<i64: 1>, scalar_prefetch = 0 : i64, scratch_operands = 0 : i64, tpu.core_type = #tpu.core_type<tc>, window_params = [{transform_indices = @transform_0, window_bounds = array<i64: 1, 2048>}, {transform_indices = @transform_1, window_bounds = array<i64: 1, 2048>}, {transform_indices = @transform_2, window_bounds = array<i64: 1, 1>}]} {
    %c0 = arith.constant 0 : index
    %c0_0 = arith.constant 0 : index
    %0 = vector.load %arg1[%c0, %c0_0] : memref<1x2048xf32, #tpu.memory_space<vmem>>, vector<1x2048xf32>
    %c0_1 = arith.constant 0 : index
    %c0_2 = arith.constant 0 : index
    %1 = vector.load %arg2[%c0_1, %c0_2] : memref<1x2048xf32, #tpu.memory_space<vmem>>, vector<1x2048xf32>
    %cst = arith.constant 0.000000e+00 : f32
    %2 = vector.broadcast %cst : f32 to vector<1x2048xf32>
    %3 = arith.cmpf ogt, %1, %2 : vector<1x2048xf32>
    %4 = math.log %1 : vector<1x2048xf32>
    %5 = arith.mulf %1, %4 : vector<1x2048xf32>
    %cst_3 = arith.constant 0.000000e+00 : f32
    %6 = vector.broadcast %cst_3 : f32 to vector<1x2048xf32>
    %7 = arith.select %3, %5, %6 : vector<1x2048xi1>, vector<1x2048xf32>
    %8 = arith.mulf %1, %0 : vector<1x2048xf32>
    %9 = arith.subf %7, %8 : vector<1x2048xf32>
    %cst_4 = arith.constant dense<0.000000e+00> : vector<2048xf32>
    %10 = vector.multi_reduction <add>, %9, %cst_4 [0] : vector<1x2048xf32> to vector<2048xf32>
    %11 = vector.shape_cast %10 : vector<2048xf32> to vector<1x2048xf32>
    %12 = vector.shape_cast %11 : vector<1x2048xf32> to vector<1x1x2048xf32>
    %cst_5 = arith.constant dense<0.000000e+00> : vector<1xf32>
    %13 = vector.multi_reduction <add>, %12, %cst_5 [1, 2] : vector<1x1x2048xf32> to vector<1xf32>
    %14 = vector.shape_cast %13 : vector<1xf32> to vector<1x1x1xf32>
    %15 = vector.extract %14[0, 0, 0] : f32 from vector<1x1x1xf32>
    %c0_6 = arith.constant 0 : index
    %c0_7 = arith.constant 0 : index
    %16 = memref.load %arg3[%c0_6, %c0_7] : memref<1x1xf32, #tpu.memory_space<smem>>
    memref.store %15, %arg3[%c0_6, %c0_7] : memref<1x1xf32, #tpu.memory_space<smem>>
    return
  }
  func.func @transform_0(%arg0: i32) -> (i32, i32) {
    %c0_i32 = arith.constant 0 : i32
    %c0_i32_0 = arith.constant 0 : i32
    return %arg0, %c0_i32 : i32, i32
  }
  func.func @transform_1(%arg0: i32) -> (i32, i32) {
    %c0_i32 = arith.constant 0 : i32
    %c0_i32_0 = arith.constant 0 : i32
    return %arg0, %c0_i32 : i32, i32
  }
  func.func @transform_2(%arg0: i32) -> (i32, i32) {
    %c0_i32 = arith.constant 0 : i32
    %c0_i32_0 = arith.constant 0 : i32
    return %arg0, %c0_i32 : i32, i32
  }
}

</mosaic_0001>

<llo_original>
// kernel: tpu_custom_call.1
$region0: #{tpu_custom_call.1}
  #allocation0 [shape = 'u32[]', space=smem, size = 0x4, offset = 0x4, fixed_abs, tag = 'smem constant byte address 0x4 - core index']
  #allocation1 [shape = 'u32[144,128]{1,0:T(1,128)}', space=vmem, size = 0x12000, scoped, tag = 'internal scratch']
  %s0 = inlined_call_operand.hbm [shape: f32[1,2048], index: 0, kind: input, shape index: {}]
  %s1 = inlined_call_operand.hbm [shape: f32[1,2048], index: 1, kind: input, shape index: {}]
  %s2 = inlined_call_operand.hbm [shape: f32[1,1], index: 2, kind: output, shape index: {}]
  %s3 = sld [smem:[#allocation0]]
  $region26: #{tpu_custom_call.1} parent=0
    _
  %s5 = ssub.s32 1, %s3
  %s6 = scalar_select 0, %s5, %s3
  $region1: #{tpu_custom_call.1} parent=0
    #allocation2 [shape = 'u8[8192]{0}', space=vmem, size = 0x2000, scoped, tag = 'input window, operand 0, single buffered']
    #allocation3 [shape = 's32[1]{0}', space=sflag, size = 0x4, scoped, tag = 'scoped memory for tpu_custom_call.1']
    #allocation4 [shape = 's32[1]{0}', space=sflag, size = 0x4, scoped, tag = 'scoped memory for tpu_custom_call.1']
    #allocation5 [shape = 'u8[8192]{0}', space=vmem, size = 0x2000, scoped, tag = 'input window, operand 1, single buffered']
    #allocation6 [shape = 's32[1]{0}', space=sflag, size = 0x4, scoped, tag = 'scoped memory for tpu_custom_call.1']
    #allocation7 [shape = 'u8[512]{0}', space=smem, size = 0x200, scoped, tag = 'output window, operand 0, single buffered']
    %7 = vsyncpa [#allocation3], 0
    %8 = vsyncpa [#allocation6], 0
    %9 = vsyncpa [#allocation4], 0
    // Predicated region
    $region2: #{tpu_custom_call.1} parent=1 // pred_check
      _
    $region3: #{tpu_custom_call.1} parent=1 // pred_check_branch
      %11 = sbr.rel (0) target = $region5
    $region4: #{tpu_custom_call.1} parent=1 // pred_region
      %s13 = ssub.s32 256, 256
      %14 = vsyncadd [#allocation3], %s13
      %s16 = sshll.u32 [#allocation2], 4
      %s17 = int_to_ptr.vmem [resolvable:$true] %s16
      %19 = dma.hbm_to_vmem [thread:$0]  %s0, 256, %s17, [#allocation3]
    $region5: #{tpu_custom_call.1} parent=1 // pred_fallthru
      _
    // Predicated region
    $region6: #{tpu_custom_call.1} parent=1 // pred_check
      _
    $region7: #{tpu_custom_call.1} parent=1 // pred_check_branch
      %21 = sbr.rel (0) target = $region9
    $region8: #{tpu_custom_call.1} parent=1 // pred_region
      %s23 = ssub.s32 256, 256
      %24 = vsyncadd [#allocation6], %s23
      %s26 = sshll.u32 [#allocation5], 4
      %s27 = int_to_ptr.vmem [resolvable:$true] %s26
      %29 = dma.hbm_to_vmem [thread:$0]  %s1, 256, %s27, [#allocation6]
    $region9: #{tpu_custom_call.1} parent=1 // pred_fallthru
      _
    // Predicated region
    $region10: #{tpu_custom_call.1} parent=1 // pred_check
      _
    $region11: #{tpu_custom_call.1} parent=1 // pred_check_branch
      %31 = sbr.rel (0) target = $region13
    $region12: #{tpu_custom_call.1} parent=1 // pred_region
      %32 = dma.done [#allocation3], 256
    $region13: #{tpu_custom_call.1} parent=1 // pred_fallthru
      _
    // Predicated region
    $region14: #{tpu_custom_call.1} parent=1 // pred_check
      _
    $region15: #{tpu_custom_call.1} parent=1 // pred_check_branch
      %34 = sbr.rel (0) target = $region17
    $region16: #{tpu_custom_call.1} parent=1 // pred_region
      %35 = dma.done [#allocation6], 256
    $region17: #{tpu_custom_call.1} parent=1 // pred_fallthru
      _
    %v36 = vld [vmem:[#allocation2] sm:$0xff]
    %v37 = vld [vmem:[#allocation2 + $0x8] sm:$0xff]
    %v38 = vld [vmem:[#allocation5] sm:$0xff]
    %v39 = vld [vmem:[#allocation5 + $0x8] sm:$0xff]
    %vm40 = vcmp.gt.f32.partialorder %v38, 0.0
    %vm41 = vcmp.gt.f32.partialorder %v39, 0.0
    %v42 = vlog2.pop %v38
    %v43 = vmul.f32 %v42, 0.6931472
    %v44 = vlog2.pop %v39
    %v45 = vmul.f32 %v44, 0.6931472
    %v46 = vmul.f32 %v38, %v43
    %v47 = vmul.f32 %v39, %v45
    %v48 = vsel %vm40, %v46, 0.0
    %v49 = vsel %vm41, %v47, 0.0
    %v50 = vmul.f32 %v38, %v36
    %v51 = vmul.f32 %v39, %v37
    %v52 = vsub.f32 %v48, %v50
    %v53 = vsub.f32 %v49, %v51
    %v54 = vadd.f32 %v52, 0.0
    %v55 = vadd.f32 %v53, 0.0
    %v58 = vlaneseq
    %v59 = vshrl.u32 %v58, 7
    %v60 = vsub.s32 0, %v59
    %v61 = vrot.slane %v54, %v60
    %v62 = vlaneseq
    %v63 = vshrl.u32 %v62, 7
    %v64 = vsub.s32 1, %v63
    %v65 = vrot.slane %v54, %v64
    %v66 = vlaneseq
    %v67 = vshrl.u32 %v66, 7
    %v68 = vsub.s32 2, %v67
    %v69 = vrot.slane %v54, %v68
    %v70 = vlaneseq
    %v71 = vshrl.u32 %v70, 7
    %v72 = vsub.s32 3, %v71
    %v73 = vrot.slane %v54, %v72
    %v74 = vlaneseq
    %v75 = vshrl.u32 %v74, 7
    %v76 = vsub.s32 4, %v75
    %v77 = vrot.slane %v54, %v76
    %v78 = vlaneseq
    %v79 = vshrl.u32 %v78, 7
    %v80 = vsub.s32 5, %v79
    %v81 = vrot.slane %v54, %v80
    %v82 = vlaneseq
    %v83 = vshrl.u32 %v82, 7
    %v84 = vsub.s32 6, %v83
    %v85 = vrot.slane %v54, %v84
    %v86 = vlaneseq
    %v87 = vshrl.u32 %v86, 7
    %v88 = vsub.s32 7, %v87
    %v89 = vrot.slane %v54, %v88
    %v90 = vlaneseq
    %v91 = vshrl.u32 %v90, 7
    %v92 = vsub.s32 0, %v91
    %v93 = vrot.slane %v55, %v92
    %v94 = vlaneseq
    %v95 = vshrl.u32 %v94, 7
    %v96 = vsub.s32 1, %v95
    %v97 = vrot.slane %v55, %v96
    %v98 = vlaneseq
    %v99 = vshrl.u32 %v98, 7
    %v100 = vsub.s32 2, %v99
    %v101 = vrot.slane %v55, %v100
    %v102 = vlaneseq
    %v103 = vshrl.u32 %v102, 7
    %v104 = vsub.s32 3, %v103
    %v105 = vrot.slane %v55, %v104
    %v106 = vlaneseq
    %v107 = vshrl.u32 %v106, 7
    %v108 = vsub.s32 4, %v107
    %v109 = vrot.slane %v55, %v108
    %v110 = vlaneseq
    %v111 = vshrl.u32 %v110, 7
    %v112 = vsub.s32 5, %v111
    %v113 = vrot.slane %v55, %v112
    %v114 = vlaneseq
    %v115 = vshrl.u32 %v114, 7
    %v116 = vsub.s32 6, %v115
    %v117 = vrot.slane %v55, %v116
    %v118 = vlaneseq
    %v119 = vshrl.u32 %v118, 7
    %v120 = vsub.s32 7, %v119
    %v121 = vrot.slane %v55, %v120
    %vm138 = vcmask 1040384
    %v139 = vsel %vm138, %v61, 0.0
    %v140 = vsel %vm138, %v65, 0.0
    %v141 = vadd.f32 %v139, %v140
    %v142 = vsel %vm138, %v69, 0.0
    %v143 = vadd.f32 %v141, %v142
    %v144 = vsel %vm138, %v73, 0.0
    %v145 = vadd.f32 %v143, %v144
    %v146 = vsel %vm138, %v77, 0.0
    %v147 = vadd.f32 %v145, %v146
    %v148 = vsel %vm138, %v81, 0.0
    %v149 = vadd.f32 %v147, %v148
    %v150 = vsel %vm138, %v85, 0.0
    %v151 = vadd.f32 %v149, %v150
    %v152 = vsel %vm138, %v89, 0.0
    %v153 = vadd.f32 %v151, %v152
    %v154 = vsel %vm138, %v93, 0.0
    %v155 = vadd.f32 %v153, %v154
    %v156 = vsel %vm138, %v97, 0.0
    %v157 = vadd.f32 %v155, %v156
    %v158 = vsel %vm138, %v101, 0.0
    %v159 = vadd.f32 %v157, %v158
    %v160 = vsel %vm138, %v105, 0.0
    %v161 = vadd.f32 %v159, %v160
    %v162 = vsel %vm138, %v109, 0.0
    %v163 = vadd.f32 %v161, %v162
    %v164 = vsel %vm138, %v113, 0.0
    %v165 = vadd.f32 %v163, %v164
    %v166 = vsel %vm138, %v117, 0.0
    %v167 = vadd.f32 %v165, %v166
    %v168 = vsel %vm138, %v121, 0.0
    %v169 = vadd.f32 %v167, %v168
    %170 = vadd.xlane.f32.xlu0 %v169
    %v171 = vpop.xlane.xlu0 %170
    %v172 = vrot.slane %v171, 4
    %v173 = vadd.f32 %v171, %v172
    %v174 = vrot.slane %v173, 2
    %v175 = vadd.f32 %v173, %v174
    %v176 = vrot.slane %v175, 1
    %v177 = vadd.f32 %v175, %v176
    %s178 = vtos %v177
    %s179 = scalar_lea.smem [#allocation7], 0
    %180 = sst [smem:[%s179]] %s178
    // Predicated region
    $region18: #{tpu_custom_call.1} parent=1 // pred_check
      _
    $region19: #{tpu_custom_call.1} parent=1 // pred_check_branch
      %182 = sbr.rel (0) target = $region21
    $region20: #{tpu_custom_call.1} parent=1 // pred_region
      %s184 = ssub.s32 16, 16
      %185 = vsyncadd [#allocation4], %s184
      %188 = dma.smem_to_hbm [#allocation7], 16, %s2, [#allocation4]
    $region21: #{tpu_custom_call.1} parent=1 // pred_fallthru
      _
    // Predicated region
    $region22: #{tpu_custom_call.1} parent=1 // pred_check
      _
    $region23: #{tpu_custom_call.1} parent=1 // pred_check_branch
      %190 = sbr.rel (0) target = $region25
    $region24: #{tpu_custom_call.1} parent=1 // pred_region
      %191 = dma.done [#allocation4], 16
    $region25: #{tpu_custom_call.1} parent=1 // pred_fallthru
      _
    %192 = sfence
    %193 = vsyncpa [#allocation3], 1
    %194 = vsyncpa [#allocation6], 1
    %195 = vsyncpa [#allocation4], 1

</llo_original>
